<compile_context>
chip_gen: v7x
topology: tpu7x:2x2x1
jax: 0.10.0
libtpu: 0.0.40
codegen_flags: <defaults>
</compile_context>

<pallas_src>
import jax
import jax.numpy as jnp
from jax.experimental import pallas as pl
from jax.experimental.pallas import tpu as pltpu

_INV_SQRT2 = 0.7071067811865476
_LN_EPS = 1e-5


def attention_pooling_kernel(x_ref, bias_ref, w1_ref, b1_ref, g_ref, be_ref,
                             w2_ref, b2_ref, o_ref):
    bt, s, d = x_ref.shape
    x = x_ref[...]                               # (Bt, S, D), native dtype
    x2 = x.reshape(bt * s, d)                    # one (Bt*S, D) tile for the MXU

    # Linear(in_dim, in_dim): MXU matmul, f32 accumulation.
    h = jnp.dot(x2, w1_ref[...], preferred_element_type=jnp.float32) + b1_ref[...]

    # LayerNorm(in_dim), eps=1e-5 (biased variance, as torch.nn.LayerNorm), f32.
    mu = jnp.mean(h, axis=-1, keepdims=True)
    var = jnp.mean(jnp.square(h - mu), axis=-1, keepdims=True)
    hn = (h - mu) * jax.lax.rsqrt(var + _LN_EPS)
    hn = hn * g_ref[...] + be_ref[...]

    # GELU — exact erf form (torch.nn.GELU default).
    act = 0.5 * hn * (1.0 + jax.lax.erf(hn * _INV_SQRT2))

    # Linear(in_dim, 1): per-token logit as VPU multiply + lane reduction
    # (an N=1 MXU matmul would waste 255/256 of the MXU output lanes).
    act3 = act.reshape(bt, s, d)
    logits = jnp.sum(act3 * w2_ref[...], axis=-1) + b2_ref[0]        # (Bt, S)

    # w[attention_mask == 0] = -inf (additive bias) ; softmax over sequence axis.
    logits = logits + bias_ref[...].reshape(bt, s)
    lmax = jnp.max(logits, axis=-1, keepdims=True)
    e = jnp.exp(logits - lmax)
    w = e / jnp.sum(e, axis=-1, keepdims=True)                        # (Bt, S)

    # attention_embeddings = sum_s w[b, s] * x[b, s, :]
    pooled = jnp.sum(w[:, :, None] * x.astype(jnp.float32), axis=1)   # (Bt, D)
    o_ref[...] = pooled.reshape(bt, 1, d).astype(o_ref.dtype)


def _choose_batch_block(B, S, D, x_itemsize):
    # MXU wants >= ~256 rows of (Bt*S, D) per pass; cap the per-step working set
    # (double-buffered input tile + ~6 live f32 activation copies) near 20 MiB so
    # 2-deep pipelining survives v7x's 64 MiB VMEM at the default scoped limit.
    rows_wanted = max(1, -(-256 // S))                     # ceil(256 / S)
    bytes_per_batch_row = S * D * (2 * x_itemsize + 6 * 4)
    vmem_cap = max(1, (20 * 1024 * 1024) // max(bytes_per_batch_row, 1))
    return max(1, min(rows_wanted, vmem_cap, B))


def attention_pooling(last_hidden_state, attention_mask, params):
    """params = (w1 [D,D], b1 [D], ln_gamma [D], ln_beta [D], w2 [D], b2 [1])"""
    B, S, D = last_hidden_state.shape
    w1, b1, gamma, beta, w2, b2 = params

    bt = _choose_batch_block(B, S, D, last_hidden_state.dtype.itemsize)
    n_blocks = pl.cdiv(B, bt)
    b_pad = n_blocks * bt
    if b_pad != B:
        pad = b_pad - B
        last_hidden_state = jnp.pad(last_hidden_state, ((0, pad), (0, 0), (0, 0)))
        # Pad mask with 1s so padded rows stay finite (they are sliced off below).
        attention_mask = jnp.pad(attention_mask, ((0, pad), (0, 0)),
                                 constant_values=1)

    # Lane-dense additive mask bias: 0 for valid tokens, -inf for padding.
    bias = jnp.where(attention_mask == 0, -jnp.inf, 0.0)
    bias = bias.astype(jnp.float32).reshape(b_pad, 1, S)

    # Small per-feature params in f32 (the LN / logit math is f32); x and W1 are
    # passed through in their native dtype (bf16 inputs hit the MXU directly).
    b1r = b1.reshape(1, D).astype(jnp.float32)
    gr = gamma.reshape(1, D).astype(jnp.float32)
    ber = beta.reshape(1, D).astype(jnp.float32)
    w2r = w2.reshape(1, D).astype(jnp.float32)
    b2r = b2.reshape(1).astype(jnp.float32)

    out = pl.pallas_call(
        attention_pooling_kernel,
        out_shape=jax.ShapeDtypeStruct((b_pad, 1, D), jnp.float32),
        grid_spec=pltpu.PrefetchScalarGridSpec(
            num_scalar_prefetch=0,
            grid=(n_blocks,),
            in_specs=[
                pl.BlockSpec((bt, S, D), lambda b: (b, 0, 0)),     # hidden states
                pl.BlockSpec((bt, 1, S), lambda b: (b, 0, 0)),     # mask bias
                pl.BlockSpec((D, D), lambda b: (0, 0)),            # W1 (DMA'd once)
                pl.BlockSpec((1, D), lambda b: (0, 0)),            # b1
                pl.BlockSpec((1, D), lambda b: (0, 0)),            # LN gamma
                pl.BlockSpec((1, D), lambda b: (0, 0)),            # LN beta
                pl.BlockSpec((1, D), lambda b: (0, 0)),            # w2 as a row
                pl.BlockSpec(memory_space=pltpu.MemorySpace.SMEM), # b2 scalar
            ],
            out_specs=pl.BlockSpec((bt, 1, D), lambda b: (b, 0, 0)),
        ),
        compiler_params=pltpu.CompilerParams(
            dimension_semantics=("parallel",)),
    )(last_hidden_state, bias, w1, b1r, gr, ber, w2r, b2r)

    return out.reshape(b_pad, D)[:B]


def attention_pooling_reference(x, mask, params):
    """Pure-JAX reference mirroring the PyTorch forward."""
    w1, b1, gamma, beta, w2, b2 = params
    h = x @ w1 + b1
    mu = h.mean(-1, keepdims=True)
    var = ((h - mu) ** 2).mean(-1, keepdims=True)
    hn = (h - mu) / jnp.sqrt(var + _LN_EPS) * gamma + beta
    act = 0.5 * hn * (1.0 + jax.lax.erf(hn * _INV_SQRT2))
    logits = act @ w2.reshape(-1, 1) + b2.reshape(1, 1)       # (B, S, 1)
    logits = jnp.where(mask[..., None] == 0, -jnp.inf, logits)
    w = jax.nn.softmax(logits, axis=1)
    return jnp.sum(w * x, axis=1)


if __name__ == "__main__":
    B, S, D = 2, 8, 32   # small shapes consistent with the module (in_dim=D)

    key = jax.random.PRNGKey(0)
    k_x, k_w1, k_b1, k_g, k_be, k_w2, k_b2 = jax.random.split(key, 7)

    last_hidden_state = jax.random.normal(k_x, (B, S, D), dtype=jnp.float32)
    # deterministic mask: batch 0 fully valid, batch 1 has last 3 tokens padded
    attention_mask = jnp.array(
        [[1] * S, [1] * (S - 3) + [0] * 3], dtype=jnp.int32)

    scale = 1.0 / jnp.sqrt(jnp.float32(D))
    params = (
        jax.random.normal(k_w1, (D, D), dtype=jnp.float32) * scale,   # W1
        jax.random.normal(k_b1, (D,), dtype=jnp.float32) * 0.1,       # b1
        1.0 + jax.random.normal(k_g, (D,), dtype=jnp.float32) * 0.1,  # LN gamma
        jax.random.normal(k_be, (D,), dtype=jnp.float32) * 0.1,       # LN beta
        jax.random.normal(k_w2, (D,), dtype=jnp.float32) * scale,     # W2
        jax.random.normal(k_b2, (1,), dtype=jnp.float32) * 0.1,       # b2
    )

    out = attention_pooling(last_hidden_state, attention_mask, params)
    out = jax.block_until_ready(out)

    ref = attention_pooling_reference(
        last_hidden_state, attention_mask.astype(jnp.float32), params)

    assert out.shape == (B, D)
    assert jnp.allclose(out, ref, atol=1e-4, rtol=1e-4), (
        f"max abs diff {jnp.max(jnp.abs(out - ref))}")

    print("KERNEL_OK")
</pallas_src>

<mosaic_0001>
module attributes {stable_mosaic.version = 11 : i64} {
  func.func @attention_pooling_kernel(%arg0: i32, %arg1: memref<2x8x32xf32, #tpu.memory_space<vmem>>, %arg2: memref<2x1x8xf32, #tpu.memory_space<vmem>>, %arg3: memref<32x32xf32, #tpu.memory_space<vmem>>, %arg4: memref<1x32xf32, #tpu.memory_space<vmem>>, %arg5: memref<1x32xf32, #tpu.memory_space<vmem>>, %arg6: memref<1x32xf32, #tpu.memory_space<vmem>>, %arg7: memref<1x32xf32, #tpu.memory_space<vmem>>, %arg8: memref<1xf32, #tpu.memory_space<smem>>, %arg9: memref<2x1x32xf32, #tpu.memory_space<vmem>>) attributes {dimension_semantics = [#tpu.dimension_semantics<parallel>], iteration_bounds = array<i64: 1>, scalar_prefetch = 0 : i64, scratch_operands = 0 : i64, tpu.core_type = #tpu.core_type<tc>, window_params = [{transform_indices = @transform_0, window_bounds = array<i64: 2, 8, 32>}, {transform_indices = @transform_1, window_bounds = array<i64: 2, 1, 8>}, {pipeline_mode = #tpu.pipeline_mode<synchronous>, transform_indices = @transform_2, window_bounds = array<i64: 32, 32>}, {pipeline_mode = #tpu.pipeline_mode<synchronous>, transform_indices = @transform_3, window_bounds = array<i64: 1, 32>}, {pipeline_mode = #tpu.pipeline_mode<synchronous>, transform_indices = @transform_4, window_bounds = array<i64: 1, 32>}, {pipeline_mode = #tpu.pipeline_mode<synchronous>, transform_indices = @transform_5, window_bounds = array<i64: 1, 32>}, {pipeline_mode = #tpu.pipeline_mode<synchronous>, transform_indices = @transform_6, window_bounds = array<i64: 1, 32>}, {transform_indices = @transform_7, window_bounds = array<i64: 1>}, {transform_indices = @transform_8, window_bounds = array<i64: 2, 1, 32>}]} {
    %c0 = arith.constant 0 : index
    %c0_0 = arith.constant 0 : index
    %c0_1 = arith.constant 0 : index
    %0 = vector.load %arg1[%c0, %c0_0, %c0_1] : memref<2x8x32xf32, #tpu.memory_space<vmem>>, vector<2x8x32xf32>
    %1 = vector.shape_cast %0 : vector<2x8x32xf32> to vector<16x32xf32>
    %c0_2 = arith.constant 0 : index
    %c0_3 = arith.constant 0 : index
    %2 = vector.load %arg3[%c0_2, %c0_3] : memref<32x32xf32, #tpu.memory_space<vmem>>, vector<32x32xf32>
    %cst = arith.constant dense<0.000000e+00> : vector<16x32xf32>
    %3 = tpu.matmul %1, %2, %cst {dimension_numbers = #tpu.dot_dimension_numbers<[1], [0], [0], [1], [0, 0, 1, 1], [], []>} : vector<16x32xf32>, vector<32x32xf32>, vector<16x32xf32> -> vector<16x32xf32>
    %c0_4 = arith.constant 0 : index
    %c0_5 = arith.constant 0 : index
    %4 = vector.load %arg4[%c0_4, %c0_5] : memref<1x32xf32, #tpu.memory_space<vmem>>, vector<1x32xf32>
    %5 = vector.broadcast %4 : vector<1x32xf32> to vector<16x32xf32>
    %6 = arith.addf %3, %5 : vector<16x32xf32>
    %cst_6 = arith.constant dense<0.000000e+00> : vector<16xf32>
    %7 = vector.multi_reduction <add>, %6, %cst_6 [1] : vector<16x32xf32> to vector<16xf32>
    %8 = vector.shape_cast %7 : vector<16xf32> to vector<16x1xf32>
    %cst_7 = arith.constant 3.200000e+01 : f32
    %9 = vector.broadcast %cst_7 : f32 to vector<16x1xf32>
    %10 = arith.divf %8, %9 : vector<16x1xf32>
    %11 = vector.broadcast %10 : vector<16x1xf32> to vector<16x32xf32>
    %12 = arith.subf %6, %11 : vector<16x32xf32>
    %13 = arith.mulf %12, %12 : vector<16x32xf32>
    %cst_8 = arith.constant dense<0.000000e+00> : vector<16xf32>
    %14 = vector.multi_reduction <add>, %13, %cst_8 [1] : vector<16x32xf32> to vector<16xf32>
    %15 = vector.shape_cast %14 : vector<16xf32> to vector<16x1xf32>
    %cst_9 = arith.constant 3.200000e+01 : f32
    %16 = vector.broadcast %cst_9 : f32 to vector<16x1xf32>
    %17 = arith.divf %15, %16 : vector<16x1xf32>
    %18 = vector.broadcast %10 : vector<16x1xf32> to vector<16x32xf32>
    %19 = arith.subf %6, %18 : vector<16x32xf32>
    %cst_10 = arith.constant 9.99999974E-6 : f32
    %20 = vector.broadcast %cst_10 : f32 to vector<16x1xf32>
    %21 = arith.addf %17, %20 : vector<16x1xf32>
    %22 = math.rsqrt %21 : vector<16x1xf32>
    %23 = vector.broadcast %22 : vector<16x1xf32> to vector<16x32xf32>
    %24 = arith.mulf %19, %23 : vector<16x32xf32>
    %c0_11 = arith.constant 0 : index
    %c0_12 = arith.constant 0 : index
    %25 = vector.load %arg5[%c0_11, %c0_12] : memref<1x32xf32, #tpu.memory_space<vmem>>, vector<1x32xf32>
    %26 = vector.broadcast %25 : vector<1x32xf32> to vector<16x32xf32>
    %27 = arith.mulf %24, %26 : vector<16x32xf32>
    %c0_13 = arith.constant 0 : index
    %c0_14 = arith.constant 0 : index
    %28 = vector.load %arg6[%c0_13, %c0_14] : memref<1x32xf32, #tpu.memory_space<vmem>>, vector<1x32xf32>
    %29 = vector.broadcast %28 : vector<1x32xf32> to vector<16x32xf32>
    %30 = arith.addf %27, %29 : vector<16x32xf32>
    %cst_15 = arith.constant 5.000000e-01 : f32
    %31 = vector.broadcast %cst_15 : f32 to vector<16x32xf32>
    %32 = arith.mulf %31, %30 : vector<16x32xf32>
    %cst_16 = arith.constant 0.707106769 : f32
    %33 = vector.broadcast %cst_16 : f32 to vector<16x32xf32>
    %34 = arith.mulf %30, %33 : vector<16x32xf32>
    %35 = math.erf %34 : vector<16x32xf32>
    %cst_17 = arith.constant 1.000000e+00 : f32
    %36 = vector.broadcast %cst_17 : f32 to vector<16x32xf32>
    %37 = arith.addf %36, %35 : vector<16x32xf32>
    %38 = arith.mulf %32, %37 : vector<16x32xf32>
    %39 = vector.shape_cast %38 : vector<16x32xf32> to vector<2x8x32xf32>
    %c0_18 = arith.constant 0 : index
    %c0_19 = arith.constant 0 : index
    %40 = vector.load %arg7[%c0_18, %c0_19] : memref<1x32xf32, #tpu.memory_space<vmem>>, vector<1x32xf32>
    %41 = vector.shape_cast %40 : vector<1x32xf32> to vector<1x1x32xf32>
    %42 = vector.broadcast %41 : vector<1x1x32xf32> to vector<2x8x32xf32>
    %43 = arith.mulf %39, %42 : vector<2x8x32xf32>
    %cst_20 = arith.constant dense<0.000000e+00> : vector<2x8xf32>
    %44 = vector.multi_reduction <add>, %43, %cst_20 [2] : vector<2x8x32xf32> to vector<2x8xf32>
    %c0_21 = arith.constant 0 : index
    %45 = memref.load %arg8[%c0_21] : memref<1xf32, #tpu.memory_space<smem>>
    %46 = vector.broadcast %45 : f32 to vector<2x8xf32>
    %47 = arith.addf %44, %46 : vector<2x8xf32>
    %c0_22 = arith.constant 0 : index
    %c0_23 = arith.constant 0 : index
    %c0_24 = arith.constant 0 : index
    %48 = vector.load %arg2[%c0_22, %c0_23, %c0_24] : memref<2x1x8xf32, #tpu.memory_space<vmem>>, vector<2x1x8xf32>
    %49 = vector.shape_cast %48 : vector<2x1x8xf32> to vector<2x8xf32>
    %50 = arith.addf %47, %49 : vector<2x8xf32>
    %cst_25 = arith.constant dense<0xFF800000> : vector<2xf32>
    %51 = vector.multi_reduction <maximumf>, %50, %cst_25 [1] : vector<2x8xf32> to vector<2xf32>
    %52 = vector.shape_cast %51 : vector<2xf32> to vector<2x1xf32>
    %53 = vector.broadcast %52 : vector<2x1xf32> to vector<2x8xf32>
    %54 = arith.subf %50, %53 : vector<2x8xf32>
    %55 = math.exp %54 : vector<2x8xf32>
    %cst_26 = arith.constant dense<0.000000e+00> : vector<2xf32>
    %56 = vector.multi_reduction <add>, %55, %cst_26 [1] : vector<2x8xf32> to vector<2xf32>
    %57 = vector.shape_cast %56 : vector<2xf32> to vector<2x1xf32>
    %58 = vector.broadcast %57 : vector<2x1xf32> to vector<2x8xf32>
    %59 = arith.divf %55, %58 : vector<2x8xf32>
    %60 = vector.shape_cast %59 : vector<2x8xf32> to vector<2x8x1xf32>
    %61 = vector.broadcast %60 : vector<2x8x1xf32> to vector<2x8x32xf32>
    %62 = arith.mulf %61, %0 : vector<2x8x32xf32>
    %cst_27 = arith.constant dense<0.000000e+00> : vector<2x32xf32>
    %63 = vector.multi_reduction <add>, %62, %cst_27 [1] : vector<2x8x32xf32> to vector<2x32xf32>
    %64 = vector.shape_cast %63 : vector<2x32xf32> to vector<2x1x32xf32>
    %c0_28 = arith.constant 0 : index
    %c0_29 = arith.constant 0 : index
    %c0_30 = arith.constant 0 : index
    %65 = vector.load %arg9[%c0_28, %c0_29, %c0_30] : memref<2x1x32xf32, #tpu.memory_space<vmem>>, vector<2x1x32xf32>
    tpu.vector_store %arg9[%c0_28, %c0_29, %c0_30], %64 {strides = array<i32>} : memref<2x1x32xf32, #tpu.memory_space<vmem>>, vector<2x1x32xf32>,
    return
  }
  func.func @transform_0(%arg0: i32) -> (i32, i32, i32) {
    %c0_i32 = arith.constant 0 : i32
    %c0_i32_0 = arith.constant 0 : i32
    %c0_i32_1 = arith.constant 0 : i32
    return %arg0, %c0_i32, %c0_i32_0 : i32, i32, i32
  }
  func.func @transform_1(%arg0: i32) -> (i32, i32, i32) {
    %c0_i32 = arith.constant 0 : i32
    %c0_i32_0 = arith.constant 0 : i32
    %c0_i32_1 = arith.constant 0 : i32
    return %arg0, %c0_i32, %c0_i32_0 : i32, i32, i32
  }
  func.func @transform_2(%arg0: i32) -> (i32, i32) {
    %c0_i32 = arith.constant 0 : i32
    %c0_i32_0 = arith.constant 0 : i32
    %c0_i32_1 = arith.constant 0 : i32
    return %c0_i32, %c0_i32_0 : i32, i32
  }
  func.func @transform_3(%arg0: i32) -> (i32, i32) {
    %c0_i32 = arith.constant 0 : i32
    %c0_i32_0 = arith.constant 0 : i32
    %c0_i32_1 = arith.constant 0 : i32
    return %c0_i32, %c0_i32_0 : i32, i32
  }
  func.func @transform_4(%arg0: i32) -> (i32, i32) {
    %c0_i32 = arith.constant 0 : i32
    %c0_i32_0 = arith.constant 0 : i32
    %c0_i32_1 = arith.constant 0 : i32
    return %c0_i32, %c0_i32_0 : i32, i32
  }
  func.func @transform_5(%arg0: i32) -> (i32, i32) {
    %c0_i32 = arith.constant 0 : i32
    %c0_i32_0 = arith.constant 0 : i32
    %c0_i32_1 = arith.constant 0 : i32
    return %c0_i32, %c0_i32_0 : i32, i32
  }
  func.func @transform_6(%arg0: i32) -> (i32, i32) {
    %c0_i32 = arith.constant 0 : i32
    %c0_i32_0 = arith.constant 0 : i32
    %c0_i32_1 = arith.constant 0 : i32
    return %c0_i32, %c0_i32_0 : i32, i32
  }
  func.func @transform_7(%arg0: i32) -> i32 {
    %c0_i32 = arith.constant 0 : i32
    %c0_i32_0 = arith.constant 0 : i32
    return %c0_i32 : i32
  }
  func.func @transform_8(%arg0: i32) -> (i32, i32, i32) {
    %c0_i32 = arith.constant 0 : i32
    %c0_i32_0 = arith.constant 0 : i32
    %c0_i32_1 = arith.constant 0 : i32
    return %arg0, %c0_i32, %c0_i32_0 : i32, i32, i32
  }
}

</mosaic_0001>

<llo_original>
// kernel: tpu_custom_call.1
$region0: #{tpu_custom_call.1}
  #allocation0 [shape = 'u32[]', space=smem, size = 0x4, offset = 0x4, fixed_abs, tag = 'smem constant byte address 0x4 - core index']
  #allocation1 [shape = 'u32[144,128]{1,0:T(1,128)}', space=vmem, size = 0x12000, scoped, tag = 'internal scratch']
  #allocation2 [shape = 'f32[1]{0:T(128)S(6)}', space=smem, size = 0x200, scoped, tag = 'scoped memory for tpu_custom_call.1']
  %s0 = inlined_call_operand.hbm [shape: f32[2,8,32], index: 0, kind: input, shape index: {}]
  %s1 = inlined_call_operand.vmem [shape: f32[2,1,8], index: 1, kind: input, shape index: {}]
  %s2 = inlined_call_operand.hbm [shape: f32[32,32], index: 2, kind: input, shape index: {}]
  %s3 = inlined_call_operand.vmem [shape: f32[1,32], index: 3, kind: input, shape index: {}]
  %s4 = inlined_call_operand.vmem [shape: f32[1,32], index: 4, kind: input, shape index: {}]
  %s5 = inlined_call_operand.vmem [shape: f32[1,32], index: 5, kind: input, shape index: {}]
  %s6 = inlined_call_operand.vmem [shape: f32[1,32], index: 6, kind: input, shape index: {}]
  %s7 = inlined_call_operand.<no memory space> [shape: f32[1], index: 7, kind: input, shape index: {}]
  %s8 = inlined_call_operand.hbm [shape: f32[2,1,32], index: 8, kind: output, shape index: {}]
  %s9 = sld [smem:[#allocation0]]
  $region50: #{tpu_custom_call.1} parent=0
    _
  %s11 = ssub.s32 1, %s9
  %s12 = scalar_select 0, %s11, %s9
  %13 = sst [smem:[#allocation2]] %s7
  $region1: #{tpu_custom_call.1} parent=0
    #allocation3 [shape = 'u8[8192]{0}', space=vmem, size = 0x2000, scoped, tag = 'input window, operand 0, single buffered']
    #allocation4 [shape = 's32[1]{0}', space=sflag, size = 0x4, scoped, tag = 'scoped memory for tpu_custom_call.1']
    #allocation5 [shape = 's32[1]{0}', space=sflag, size = 0x4, scoped, tag = 'scoped memory for tpu_custom_call.1']
    #allocation6 [shape = 'u8[16384]{0}', space=vmem, size = 0x4000, scoped, tag = 'input window, operand 2, single buffered']
    #allocation7 [shape = 's32[1]{0}', space=sflag, size = 0x4, scoped, tag = 'scoped memory for tpu_custom_call.1']
    #allocation8 [shape = 'u8[1024]{0}', space=vmem, size = 0x400, scoped, tag = 'output window, operand 0, single buffered']
    %14 = vsyncpa [#allocation4], 0
    %15 = vsyncpa [#allocation7], 0
    %16 = vsyncpa [#allocation5], 0
    // Predicated region
    $region2: #{tpu_custom_call.1} parent=1 // pred_check
      _
    $region3: #{tpu_custom_call.1} parent=1 // pred_check_branch
      %18 = sbr.rel (0) target = $region5
    $region4: #{tpu_custom_call.1} parent=1 // pred_region
      %s20 = ssub.s32 256, 256
      %21 = vsyncadd [#allocation4], %s20
      %s22 = sshll.u32 [#allocation3], 4
      %s23 = int_to_ptr.vmem [resolvable:$true] %s22
      %28 = dma.hbm_to_vmem [thread:$0]  %s0, 256, %s23, [#allocation4], 128, 128, 8
    $region5: #{tpu_custom_call.1} parent=1 // pred_fallthru
      _
    // Predicated region
    $region6: #{tpu_custom_call.1} parent=1 // pred_check
      _
    $region7: #{tpu_custom_call.1} parent=1 // pred_check_branch
      %30 = sbr.rel (0) target = $region9
    $region8: #{tpu_custom_call.1} parent=1 // pred_region
      _
    $region9: #{tpu_custom_call.1} parent=1 // pred_fallthru
      _
    // Predicated region
    $region10: #{tpu_custom_call.1} parent=1 // pred_check
      _
    $region11: #{tpu_custom_call.1} parent=1 // pred_check_branch
      %32 = sbr.rel (0) target = $region13
    $region12: #{tpu_custom_call.1} parent=1 // pred_region
      %s34 = ssub.s32 512, 512
      %35 = vsyncadd [#allocation7], %s34
      %s36 = sshll.u32 [#allocation6], 4
      %s37 = int_to_ptr.vmem [resolvable:$true] %s36
      %42 = dma.hbm_to_vmem [thread:$0]  %s2, 512, %s37, [#allocation7], 128, 128, 8
    $region13: #{tpu_custom_call.1} parent=1 // pred_fallthru
      _
    // Predicated region
    $region14: #{tpu_custom_call.1} parent=1 // pred_check
      _
    $region15: #{tpu_custom_call.1} parent=1 // pred_check_branch
      %44 = sbr.rel (0) target = $region17
    $region16: #{tpu_custom_call.1} parent=1 // pred_region
      _
    $region17: #{tpu_custom_call.1} parent=1 // pred_fallthru
      _
    // Predicated region
    $region18: #{tpu_custom_call.1} parent=1 // pred_check
      _
    $region19: #{tpu_custom_call.1} parent=1 // pred_check_branch
      %46 = sbr.rel (0) target = $region21
    $region20: #{tpu_custom_call.1} parent=1 // pred_region
      _
    $region21: #{tpu_custom_call.1} parent=1 // pred_fallthru
      _
    // Predicated region
    $region22: #{tpu_custom_call.1} parent=1 // pred_check
      _
    $region23: #{tpu_custom_call.1} parent=1 // pred_check_branch
      %48 = sbr.rel (0) target = $region25
    $region24: #{tpu_custom_call.1} parent=1 // pred_region
      _
    $region25: #{tpu_custom_call.1} parent=1 // pred_fallthru
      _
    // Predicated region
    $region26: #{tpu_custom_call.1} parent=1 // pred_check
      _
    $region27: #{tpu_custom_call.1} parent=1 // pred_check_branch
      %50 = sbr.rel (0) target = $region29
    $region28: #{tpu_custom_call.1} parent=1 // pred_region
      _
    $region29: #{tpu_custom_call.1} parent=1 // pred_fallthru
      _
    // Predicated region
    $region30: #{tpu_custom_call.1} parent=1 // pred_check
      _
    $region31: #{tpu_custom_call.1} parent=1 // pred_check_branch
      %52 = sbr.rel (0) target = $region33
    $region32: #{tpu_custom_call.1} parent=1 // pred_region
      _
    $region33: #{tpu_custom_call.1} parent=1 // pred_fallthru
      _
    // Predicated region
    $region34: #{tpu_custom_call.1} parent=1 // pred_check
      _
    $region35: #{tpu_custom_call.1} parent=1 // pred_check_branch
      %54 = sbr.rel (0) target = $region37
    $region36: #{tpu_custom_call.1} parent=1 // pred_region
      %55 = dma.done [#allocation4], 256
    $region37: #{tpu_custom_call.1} parent=1 // pred_fallthru
      _
    // Predicated region
    $region38: #{tpu_custom_call.1} parent=1 // pred_check
      _
    $region39: #{tpu_custom_call.1} parent=1 // pred_check_branch
      %57 = sbr.rel (0) target = $region41
    $region40: #{tpu_custom_call.1} parent=1 // pred_region
      %58 = dma.done [#allocation7], 512
    $region41: #{tpu_custom_call.1} parent=1 // pred_fallthru
      _
    %v59 = vld [vmem:[#allocation3] sm:$0xff]
    %v60 = vld [vmem:[#allocation3 + $0x8] sm:$0xff]
    %v61 = vld [vmem:[#allocation6] sm:$0xff]
    %v62 = vld [vmem:[#allocation6 + $0x8] sm:$0xff]
    %v63 = vld [vmem:[#allocation6 + $0x10] sm:$0xff]
    %v64 = vld [vmem:[#allocation6 + $0x18] sm:$0xff]
    %v65 = vld [vmem:[%s3] sm:$0x1]
    %v67 = vlaneseq
    %v68 = vshrl.u32 %v67, 7
    %v69 = vsub.s32 0, %v68
    %v70 = vrot.slane %v65, %v69
    %vm72 = vcmask 261120
    %v74 = vsel %vm72, %v59, 0
    %v77 = vsel %vm72, %v60, 0
    %79 = vmatprep.subr.mxu0 0.0
    %80 = vmatpush1.msra.mxu0 %v61
    %81 = vmatprep.subr.mxu0 0.0
    %82 = vmatpush1.msra.mxu0 %v62
    %83 = vmatprep.subr.mxu0 0.0
    %84 = vmatpush1.msra.mxu0 %v63
    %85 = vmatprep.subr.mxu0 0.0
    %86 = vmatpush1.msra.mxu0 %v64
    %87 = vmatprep.subr.mxu0 0.0
    %88 = vmatpush1.msra.mxu0 0.0
    %89 = vmatprep.subr.mxu0 0.0
    %90 = vmatpush1.msra.mxu0 0.0
    %91 = vmatprep.subr.mxu0 0.0
    %92 = vmatpush1.msra.mxu0 0.0
    %93 = vmatprep.subr.mxu0 0.0
    %94 = vmatpush1.msra.mxu0 0.0
    %95 = vmatprep.subr.mxu0 0.0
    %96 = vmatpush1.msra.mxu0 0.0
    %97 = vmatprep.subr.mxu0 0.0
    %98 = vmatpush1.msra.mxu0 0.0
    %99 = vmatprep.subr.mxu0 0.0
    %100 = vmatpush1.msra.mxu0 0.0
    %101 = vmatprep.subr.mxu0 0.0
    %102 = vmatpush1.msra.mxu0 0.0
    %103 = vmatprep.subr.mxu0 0.0
    %104 = vmatpush1.msra.mxu0 0.0
    %105 = vmatprep.subr.mxu0 0.0
    %106 = vmatpush1.msra.mxu0 0.0
    %107 = vmatprep.subr.mxu0 0.0
    %108 = vmatpush1.msra.mxu0 0.0
    %109 = vmatprep.subr.mxu0 0.0
    %110 = vmatpush1.msra.mxu0 0.0
    %111 = vmatprep.subr.mxu0 0.0
    %112 = vmatpush1.msra.mxu0 0.0
    %113 = vmatprep.subr.mxu0 0.0
    %114 = vmatpush1.msra.mxu0 0.0
    %115 = vmatprep.subr.mxu0 0.0
    %116 = vmatpush1.msra.mxu0 0.0
    %117 = vmatprep.subr.mxu0 0.0
    %118 = vmatpush1.msra.mxu0 0.0
    %119 = vmatprep.subr.mxu0 0.0
    %120 = vmatpush1.msra.mxu0 0.0
    %121 = vmatprep.subr.mxu0 0.0
    %122 = vmatpush1.msra.mxu0 0.0
    %123 = vmatprep.subr.mxu0 0.0
    %124 = vmatpush1.msra.mxu0 0.0
    %125 = vmatprep.subr.mxu0 0.0
    %126 = vmatpush1.msra.mxu0 0.0
    %127 = vmatprep.subr.mxu0 0.0
    %128 = vmatpush1.msra.mxu0 0.0
    %129 = vmatprep.subr.mxu0 0.0
    %130 = vmatpush1.msra.mxu0 0.0
    %131 = vmatprep.subr.mxu0 0.0
    %132 = vmatpush1.msra.mxu0 0.0
    %133 = vmatprep.subr.mxu0 0.0
    %134 = vmatpush1.msra.mxu0 0.0
    %135 = vmatprep.subr.mxu0 0.0
    %136 = vmatpush1.msra.mxu0 0.0
    %137 = vmatprep.subr.mxu0 0.0
    %138 = vmatpush1.msra.mxu0 0.0
    %139 = vmatprep.subr.mxu0 0.0
    %140 = vmatpush1.msra.mxu0 0.0
    %141 = vmatprep.subr.mxu0 0.0
    %142 = vmatpush1.msra.mxu0 0.0
    %143 = vmatprep.mubr.f32.mxu0 0.0
    %144 = vmatmul.mubr.f32.gmra.mrb[0].mxu0 %v74
    %v145 = vpop.f32.mrb[0].mxu0
    %v146 = vadd.f32 %v70, %v145
    %v147 = vpop.f32.mrb[0].mxu0
    %148 = vmatprep.mubr.f32.mxu0 0.0
    %149 = vmatmul.mubr.f32.gmra.mrb[0].mxu0 %v77
    %v150 = vpop.f32.mrb[0].mxu0
    %v151 = vadd.f32 %v70, %v150
    %v152 = vpop.f32.mrb[0].mxu0
    %153 = vdwg.mxu0
    %v154 = vsel %vm72, %v146, 0.0
    %155 = vadd.xlane.f32.xlu0 %v154
    %v156 = vpop.xlane.xlu0 %155
    %v157 = vsel %vm72, %v151, 0.0
    %158 = vadd.xlane.f32.xlu0 %v157
    %v159 = vpop.xlane.xlu0 %158
    %v160 = vrcp.pop 32.0
    %v161 = vmul.f32 %v156, %v160
    %v162 = vmul.f32 %v159, %v160
    %v163 = vsub.f32 %v146, %v161
    %v164 = vsub.f32 %v151, %v162
    %v165 = vmul.f32 %v163, %v163
    %v166 = vmul.f32 %v164, %v164
    %v167 = vsel %vm72, %v165, 0.0
    %168 = vadd.xlane.f32.xlu0 %v167
    %v169 = vpop.xlane.xlu0 %168
    %v170 = vsel %vm72, %v166, 0.0
    %171 = vadd.xlane.f32.xlu0 %v170
    %v172 = vpop.xlane.xlu0 %171
    %v173 = vmul.f32 %v169, %v160
    %v174 = vmul.f32 %v172, %v160
    %v175 = vadd.f32 %v173, 1e-05
    %v176 = vadd.f32 %v174, 1e-05
    %v177 = vrsqrt.pop %v175
    %v178 = vrsqrt.pop %v176
    %v179 = vmul.f32 %v163, %v177
    %v180 = vmul.f32 %v164, %v178
    %v181 = vld [vmem:[%s4] sm:$0x1]
    %v183 = vlaneseq
    %v184 = vshrl.u32 %v183, 7
    %v185 = vsub.s32 0, %v184
    %v186 = vrot.slane %v181, %v185
    %v188 = vmul.f32 %v179, %v186
    %v189 = vmul.f32 %v180, %v186
    %v190 = vld [vmem:[%s5] sm:$0x1]
    %v192 = vlaneseq
    %v193 = vshrl.u32 %v192, 7
    %v194 = vsub.s32 0, %v193
    %v195 = vrot.slane %v190, %v194
    %v197 = vadd.f32 %v188, %v195
    %v198 = vadd.f32 %v189, %v195
    %v199 = vmul.f32 %v197, 0.5
    %v200 = vmul.f32 %v198, 0.5
    %v201 = vmul.f32 %v197, 0.70710677
    %v202 = vmul.f32 %v198, 0.70710677
    %v203 = verf.f32.pop %v201
    %v204 = verf.f32.pop %v202
    %v205 = vadd.f32 %v203, 1.0
    %v206 = vadd.f32 %v204, 1.0
    %v207 = vmul.f32 %v199, %v205
    %v208 = vmul.f32 %v200, %v206
    %v209 = vld [vmem:[%s6] sm:$0x1]
    %v211 = vlaneseq
    %v212 = vshrl.u32 %v211, 7
    %v213 = vsub.s32 0, %v212
    %v214 = vrot.slane %v209, %v213
    %v216 = vmul.f32 %v207, %v214
    %v217 = vmul.f32 %v208, %v214
    %v218 = vsel %vm72, %v216, 0.0
    %219 = vadd.xlane.f32.xlu0 %v218
    %v220 = vpop.xlane.xlu0 %219
    %v221 = vsel %vm72, %v217, 0.0
    %222 = vadd.xlane.f32.xlu0 %v221
    %v223 = vpop.xlane.xlu0 %222
    %s224 = sld [smem:[#allocation2]]
    %v225 = vstv %s224
    %v226 = vadd.f32 %v220, %v225
    %v227 = vadd.f32 %v223, %v225
    %v228 = vld [vmem:[%s1] sm:$0x1]
    %v229 = vld [vmem:[%s1 + $0x1] sm:$0x1]
    %v232 = vlaneseq
    %v233 = vshrl.u32 %v232, 7
    %v234 = vsub.s32 0, %v233
    %v235 = vrot.slane %v228, %v234
    %v236 = vlaneseq
    %v237 = vshrl.u32 %v236, 7
    %v238 = vsub.s32 0, %v237
    %v239 = vrot.slane %v229, %v238
    %241 = vbcast.lane.b32.xlu0 %v235, 256
    %v242 = vpop.permute.xlu0 %241
    %244 = vbcast.lane.b32.xlu0 %v239, 256
    %v245 = vpop.permute.xlu0 %244
    %v248 = vadd.f32 %v226, %v242
    %v249 = vadd.f32 %v227, %v245
    %252 = vset.pattern.permute.xlu0 0
    %253 = vperm.xlu0 %252, %v248
    %v254 = vpop.permute.xlu0 %253
    %255 = vset.pattern.permute.xlu0 0
    %256 = vperm.xlu0 %255, %v249
    %v257 = vpop.permute.xlu0 %256
    %v258 = vlaneseq
    %v259 = vand.u32 %v258, 127
    %v260 = vlaneseq
    %v261 = vshrl.u32 %v260, 7
    %v262 = vsub.s32 %v259, %v261
    %v263 = vrot.slane %v254, %v262
    %v264 = vlaneseq
    %v265 = vshrl.u32 %v264, 7
    %v266 = vsub.s32 %v259, %v265
    %v267 = vrot.slane %v257, %v266
    %vm268 = vcmask 1041409
    %v269 = vsel %vm268, %v267, %v263
    %vm271 = vcmask 58368
    %v272 = vsel %vm271, %v269, -inf
    %273 = vmax.xlane.f32.xlu0 %v272
    %v274 = vpop.xlane.xlu0 %273
    %v276 = vlaneseq
    %v277 = vshrl.u32 %v276, 7
    %v278 = vsub.s32 0, %v277
    %v279 = vrot.slane %v274, %v278
    %v280 = vlaneseq
    %v281 = vshrl.u32 %v280, 7
    %v282 = vsub.s32 1, %v281
    %v283 = vrot.slane %v274, %v282
    %v286 = vsub.f32 %v248, %v279
    %v287 = vsub.f32 %v249, %v283
    %v288 = vmul.f32 %v286, 1.442695
    %v289 = vpow.pop %v288
    %v290 = vmul.f32 %v287, 1.442695
    %v291 = vpow.pop %v290
    %294 = vset.pattern.permute.xlu0 0
    %295 = vperm.xlu0 %294, %v289
    %v296 = vpop.permute.xlu0 %295
    %297 = vset.pattern.permute.xlu0 0
    %298 = vperm.xlu0 %297, %v291
    %v299 = vpop.permute.xlu0 %298
    %v300 = vlaneseq
    %v301 = vshrl.u32 %v300, 7
    %v302 = vsub.s32 %v259, %v301
    %v303 = vrot.slane %v296, %v302
    %v304 = vlaneseq
    %v305 = vshrl.u32 %v304, 7
    %v306 = vsub.s32 %v259, %v305
    %v307 = vrot.slane %v299, %v306
    %v308 = vsel %vm268, %v307, %v303
    %v310 = vsel %vm271, %v308, 0.0
    %311 = vadd.xlane.f32.xlu0 %v310
    %v312 = vpop.xlane.xlu0 %311
    %v314 = vlaneseq
    %v315 = vshrl.u32 %v314, 7
    %v316 = vsub.s32 0, %v315
    %v317 = vrot.slane %v312, %v316
    %v318 = vlaneseq
    %v319 = vshrl.u32 %v318, 7
    %v320 = vsub.s32 1, %v319
    %v321 = vrot.slane %v312, %v320
    %v324 = vrcp.pop %v317
    %v325 = vmul.f32 %v289, %v324
    %v326 = vrcp.pop %v321
    %v327 = vmul.f32 %v291, %v326
    %329 = vset.pattern.permute.xlu0 0
    %330 = vperm.xlu0 %329, %v325
    %v331 = vpop.permute.xlu0 %330
    %334 = vset.pattern.permute.xlu0 0
    %335 = vperm.xlu0 %334, %v327
    %v336 = vpop.permute.xlu0 %335
    %v338 = vmul.f32 %v331, %v59
    %v339 = vmul.f32 %v336, %v60
    %v340 = vsel %vm72, %v338, 0.0
    %v341 = vrot.slane %v340, 4
    %v342 = vadd.f32 %v340, %v341
    %v343 = vrot.slane %v342, 2
    %v344 = vadd.f32 %v342, %v343
    %v345 = vrot.slane %v344, 1
    %v346 = vadd.f32 %v344, %v345
    %v347 = vsel %vm72, %v339, 0.0
    %v348 = vrot.slane %v347, 4
    %v349 = vadd.f32 %v347, %v348
    %v350 = vrot.slane %v349, 2
    %v351 = vadd.f32 %v349, %v350
    %v352 = vrot.slane %v351, 1
    %v353 = vadd.f32 %v351, %v352
    %vm354 = vcmask 253952
    %355 = vst.msk [vmem:[#allocation8] sm:$0x1] %vm354, %v346
    %356 = vst.msk [vmem:[#allocation8 + $0x1] sm:$0x1] %vm354, %v353
    // Predicated region
    $region42: #{tpu_custom_call.1} parent=1 // pred_check
      _
    $region43: #{tpu_custom_call.1} parent=1 // pred_check_branch
      %358 = sbr.rel (0) target = $region45
    $region44: #{tpu_custom_call.1} parent=1 // pred_region
      %s360 = ssub.s32 32, 32
      %361 = vsyncadd [#allocation5], %s360
      %s362 = sshll.u32 [#allocation8], 4
      %s363 = int_to_ptr.vmem [resolvable:$true] %s362
      %368 = dma.vmem_to_hbm [thread:$0]  %s363, 32, %s8, [#allocation5], 16, 16, 1
    $region45: #{tpu_custom_call.1} parent=1 // pred_fallthru
      _
    // Predicated region
    $region46: #{tpu_custom_call.1} parent=1 // pred_check
      _
    $region47: #{tpu_custom_call.1} parent=1 // pred_check_branch
      %370 = sbr.rel (0) target = $region49
    $region48: #{tpu_custom_call.1} parent=1 // pred_region
      %371 = dma.done [#allocation5], 32
    $region49: #{tpu_custom_call.1} parent=1 // pred_fallthru
      _
    %372 = vsyncpa [#allocation4], 1
    %373 = vsyncpa [#allocation7], 1
    %374 = vsyncpa [#allocation5], 1

</llo_original>
